<compile_context>
chip_gen: v6e
topology: v6e:2x2x1
jax: 0.10.0
libtpu: 0.0.40
codegen_flags: <defaults>
</compile_context>

<pallas_src>
import functools

import jax
import jax.numpy as jnp
from jax import lax
from jax.experimental import pallas as pl
from jax.experimental.pallas import tpu as pltpu

EPS = 1e-6  # TODO(synk): the custom RMSNorm's eps is not shown in the spec; using 1e-6.

# murmur/splitmix finalizer constants, expressed as wrapped int32
_H1 = -1640531527   # 0x9E3779B9
_H2 = -2048144789   # 0x85EBCA6B
_H3 = -1028477387   # 0xC2B2AE35


def _srl(v, s):
    return lax.shift_right_logical(v, jnp.int32(s))


def _conv_taps(x, pad):
    """Return (TB, L, K*C) with taps x[:, t + pad - k, :] (zeros outside), K = 2*pad+1."""
    TB, L, C = x.shape
    z = jnp.zeros((TB, pad, C), x.dtype)
    xp = jnp.concatenate([z, x, z], axis=1)                     # (TB, L + 2*pad, C)
    K = 2 * pad + 1
    taps = [xp[:, 2 * pad - k: 2 * pad - k + L, :] for k in range(K)]
    return jnp.concatenate(taps, axis=-1)                       # (TB, L, K*C)


def conv_block_decoder_kernel(eps, drop_thresh, keep_scale,
                              seed_ref, x_ref, w1_ref, g1_ref,
                              w2_ref, b2_ref, g2_ref, bb2_ref, out_ref):
    TB, L, Cin = x_ref.shape
    Cout = w1_ref.shape[1]

    # --- ConvTranspose1d #1: K=3, stride=1, padding=1, no bias --------------
    # y[t] = sum_k x[t + 1 - k] @ W1[k]  ==  taps(x) @ W1_flat  (single MXU push)
    x = x_ref[...]                                              # native dtype
    xc = _conv_taps(x, 1).reshape(TB * L, 3 * Cin)
    h = jnp.dot(xc, w1_ref[...], preferred_element_type=jnp.float32)   # (TB*L, Cout) f32

    # --- RMSNorm #1 (weight only), normalized over channels -----------------
    h = h * lax.rsqrt(jnp.mean(h * h, axis=-1, keepdims=True) + eps)
    h = h * g1_ref[...].astype(jnp.float32)

    # --- SiLU ----------------------------------------------------------------
    h = h * (1.0 / (1.0 + jnp.exp(-h)))

    # --- ConvTranspose1d #2: K=5, stride=1, padding=2, with bias -------------
    h = h.astype(w2_ref.dtype).reshape(TB, L, Cout)             # keep native MXU dtype
    hc = _conv_taps(h, 2).reshape(TB * L, 5 * Cout)
    y = jnp.dot(hc, w2_ref[...], preferred_element_type=jnp.float32)
    y = y + b2_ref[...].astype(jnp.float32)                     # bias after accumulation

    # --- RMSNorm #2 (weight + bias) -------------------------------------------
    y = y * lax.rsqrt(jnp.mean(y * y, axis=-1, keepdims=True) + eps)
    y = y * g2_ref[...].astype(jnp.float32) + bb2_ref[...].astype(jnp.float32)

    # --- Dropout (F.dropout default = training mode) --------------------------
    # Integer-domain keep decision on a position/seed hash; skipped statically
    # when p == 0 or training=False (drop_thresh is None).
    if drop_thresh is not None:
        n = TB * L
        row = lax.broadcasted_iota(jnp.int32, (n, Cout), 0)
        col = lax.broadcasted_iota(jnp.int32, (n, Cout), 1)
        idx = (pl.program_id(0) * n + row) * Cout + col
        hsh = idx + seed_ref[0] * jnp.int32(_H1)
        hsh = (hsh ^ _srl(hsh, 16)) * jnp.int32(_H2)
        hsh = (hsh ^ _srl(hsh, 13)) * jnp.int32(_H3)
        hsh = hsh ^ _srl(hsh, 16)
        keep = hsh >= jnp.int32(drop_thresh)                    # P(keep) = 1 - p
        y = jnp.where(keep, y * keep_scale, 0.0)

    out_ref[...] = y.reshape(TB, L, Cout).astype(out_ref.dtype)


def _pick_block_b(B, L, target_rows=2048):
    """Largest divisor of B with block_b * L <= target_rows (VMEM-friendly)."""
    bb = 1
    for cand in range(1, B + 1):
        if B % cand == 0 and cand * L <= max(target_rows, L):
            bb = cand
    return bb


def conv_block_decoder(x, w1, g1, w2, b2, g2, bb2, *, p=0.2, seed=0,
                       training=True, eps=EPS, block_b=None):
    """x: (B, L, Cin). w1: (3, Cin, Cout), w2: (5, Cout, Cout), i.e. the PyTorch
    ConvTranspose1d weights permuted with .permute(2, 0, 1). g1/b2/g2/bb2: (Cout,)."""
    B, L, Cin = x.shape
    K1, Cin_w, Cout = w1.shape
    assert (K1, Cin_w) == (3, Cin), "w1 must be (3, Cin, Cout)"
    assert w2.shape == (5, Cout, Cout), "w2 must be (5, Cout, Cout)"

    w1f = jnp.reshape(w1, (3 * Cin, Cout))
    w2f = jnp.reshape(w2, (5 * Cout, Cout))
    g1v = jnp.reshape(g1, (1, Cout))
    b2v = jnp.reshape(b2, (1, Cout))
    g2v = jnp.reshape(g2, (1, Cout))
    bb2v = jnp.reshape(bb2, (1, Cout))

    if block_b is None:
        block_b = _pick_block_b(B, L)
    assert B % block_b == 0

    use_dropout = training and p > 0.0
    if use_dropout:
        assert p < 1.0, "dropout p must be < 1"
        drop_thresh = int(p * (1 << 32)) - (1 << 31)    # signed-int32 threshold
        keep_scale = 1.0 / (1.0 - p)
    else:
        drop_thresh = None
        keep_scale = 1.0

    seed_arr = jnp.array([seed], dtype=jnp.int32)
    kern = functools.partial(conv_block_decoder_kernel, eps, drop_thresh, keep_scale)

    return pl.pallas_call(
        kern,
        out_shape=jax.ShapeDtypeStruct((B, L, Cout), x.dtype),
        grid_spec=pltpu.PrefetchScalarGridSpec(
            num_scalar_prefetch=1,
            grid=(B // block_b,),
            in_specs=[
                pl.BlockSpec((block_b, L, Cin), lambda b, seed: (b, 0, 0)),
                pl.BlockSpec((3 * Cin, Cout), lambda b, seed: (0, 0)),
                pl.BlockSpec((1, Cout), lambda b, seed: (0, 0)),
                pl.BlockSpec((5 * Cout, Cout), lambda b, seed: (0, 0)),
                pl.BlockSpec((1, Cout), lambda b, seed: (0, 0)),
                pl.BlockSpec((1, Cout), lambda b, seed: (0, 0)),
                pl.BlockSpec((1, Cout), lambda b, seed: (0, 0)),
            ],
            out_specs=pl.BlockSpec((block_b, L, Cout), lambda b, seed: (b, 0, 0)),
        ),
        compiler_params=pltpu.CompilerParams(
            dimension_semantics=("parallel",)),   # batch blocks are independent
    )(seed_arr, x, w1f, g1v, w2f, b2v, g2v, bb2v)


# ---------------- pure-JAX reference (everything except dropout) -------------
def ref_forward_no_dropout(x, w1, g1, w2, b2, g2, bb2):
    x = x.astype(jnp.float32)
    B, L, _ = x.shape

    def convt(h, w, pad, bias=None):
        K = w.shape[0]
        y = jnp.zeros((B, L, w.shape[2]), jnp.float32)
        for k in range(K):
            s = pad - k
            hp = jnp.pad(h, ((0, 0), (max(0, -s), max(0, s)), (0, 0)))
            hs = hp[:, max(0, s):max(0, s) + L, :]
            y = y + jnp.einsum('blc,co->blo', hs, w[k])
        if bias is not None:
            y = y + bias
        return y

    def rms(h, g, beta=None):
        r = lax.rsqrt(jnp.mean(h * h, axis=-1, keepdims=True) + EPS)
        out = h * r * g
        if beta is not None:
            out = out + beta
        return out

    h = convt(x, w1, 1)
    h = rms(h, g1)
    h = h * jax.nn.sigmoid(h)
    y = convt(h, w2, 2, bias=b2)
    y = rms(y, g2, beta=bb2)
    return y


if __name__ == "__main__":
    B, L, Cin, Cout = 2, 16, 4, 8
    p = 0.2

    key = jax.random.PRNGKey(0)
    k1, k2, k3, k4, k5, k6, k7 = jax.random.split(key, 7)
    # ConvTranspose1d weights stored as (K, Cin, Cout) (PyTorch is (Cin, Cout, K))
    w1 = jax.random.normal(k1, (3, Cin, Cout), jnp.float32) * 0.3
    g1 = 1.0 + 0.1 * jax.random.normal(k2, (Cout,), jnp.float32)
    w2 = jax.random.normal(k3, (5, Cout, Cout), jnp.float32) * 0.2
    b2 = 0.1 * jax.random.normal(k4, (Cout,), jnp.float32)
    g2 = 1.0 + 0.1 * jax.random.normal(k5, (Cout,), jnp.float32)
    bb2 = 0.1 * jax.random.normal(k6, (Cout,), jnp.float32)
    x = jax.random.normal(k7, (B, L, Cin), jnp.float32)

    out = conv_block_decoder(x, w1, g1, w2, b2, g2, bb2, p=p, seed=1234)
    out = jax.block_until_ready(out)

    # Check against reference: kept positions must equal ref / (1 - p),
    # dropped positions are exactly zero; drop rate should look like ~p.
    ref = ref_forward_no_dropout(x, w1, g1.reshape(1, Cout), w2,
                                 b2.reshape(1, Cout), g2.reshape(1, Cout),
                                 bb2.reshape(1, Cout))
    kept = out != 0.0
    n_total = out.size
    n_kept = int(jnp.sum(kept))
    max_err = jnp.max(jnp.abs(jnp.where(kept, out - ref / (1.0 - p), 0.0)))

    assert out.shape == (B, L, Cout)
    assert bool(jnp.all(jnp.isfinite(out)))
    assert 0 < n_kept < n_total, "dropout produced a degenerate mask"
    drop_rate = 1.0 - n_kept / n_total
    assert 0.02 < drop_rate < 0.5, f"implausible drop rate {drop_rate}"
    assert float(max_err) < 1e-4, f"mismatch on kept entries: {max_err}"

    print("KERNEL_OK")
</pallas_src>

<mosaic_0001>
module attributes {stable_mosaic.version = 11 : i64} {
  func.func @conv_block_decoder_kernel(%arg0: i32, %arg1: memref<1xi32, #tpu.memory_space<smem>>, %arg2: memref<2x16x4xf32, #tpu.memory_space<vmem>>, %arg3: memref<12x8xf32, #tpu.memory_space<vmem>>, %arg4: memref<1x8xf32, #tpu.memory_space<vmem>>, %arg5: memref<40x8xf32, #tpu.memory_space<vmem>>, %arg6: memref<1x8xf32, #tpu.memory_space<vmem>>, %arg7: memref<1x8xf32, #tpu.memory_space<vmem>>, %arg8: memref<1x8xf32, #tpu.memory_space<vmem>>, %arg9: memref<2x16x8xf32, #tpu.memory_space<vmem>>) attributes {dimension_semantics = [#tpu.dimension_semantics<parallel>], iteration_bounds = array<i64: 1>, scalar_prefetch = 1 : i64, scratch_operands = 0 : i64, tpu.core_type = #tpu.core_type<tc>, window_params = [{transform_indices = @transform_0, window_bounds = array<i64: 2, 16, 4>}, {pipeline_mode = #tpu.pipeline_mode<synchronous>, transform_indices = @transform_1, window_bounds = array<i64: 12, 8>}, {pipeline_mode = #tpu.pipeline_mode<synchronous>, transform_indices = @transform_2, window_bounds = array<i64: 1, 8>}, {pipeline_mode = #tpu.pipeline_mode<synchronous>, transform_indices = @transform_3, window_bounds = array<i64: 40, 8>}, {pipeline_mode = #tpu.pipeline_mode<synchronous>, transform_indices = @transform_4, window_bounds = array<i64: 1, 8>}, {pipeline_mode = #tpu.pipeline_mode<synchronous>, transform_indices = @transform_5, window_bounds = array<i64: 1, 8>}, {pipeline_mode = #tpu.pipeline_mode<synchronous>, transform_indices = @transform_6, window_bounds = array<i64: 1, 8>}, {transform_indices = @transform_7, window_bounds = array<i64: 2, 16, 8>}]} {
    %c0 = arith.constant 0 : index
    %c0_0 = arith.constant 0 : index
    %c0_1 = arith.constant 0 : index
    %0 = vector.load %arg2[%c0, %c0_0, %c0_1] : memref<2x16x4xf32, #tpu.memory_space<vmem>>, vector<2x16x4xf32>
    %cst = arith.constant 0.000000e+00 : f32
    %1 = vector.broadcast %cst : f32 to vector<2x1x4xf32>
    %2 = tpu.concatenate %1, %0, %1 in 1 : vector<2x1x4xf32>, vector<2x16x4xf32>, vector<2x1x4xf32> -> vector<2x18x4xf32>
    %3 = vector.extract_strided_slice %2 {offsets = [0, 2, 0], sizes = [2, 16, 4], strides = [1, 1, 1]} : vector<2x18x4xf32> to vector<2x16x4xf32>
    %4 = vector.extract_strided_slice %2 {offsets = [0, 1, 0], sizes = [2, 16, 4], strides = [1, 1, 1]} : vector<2x18x4xf32> to vector<2x16x4xf32>
    %5 = vector.extract_strided_slice %2 {offsets = [0, 0, 0], sizes = [2, 16, 4], strides = [1, 1, 1]} : vector<2x18x4xf32> to vector<2x16x4xf32>
    %6 = tpu.concatenate %3, %4, %5 in 2 : vector<2x16x4xf32>, vector<2x16x4xf32>, vector<2x16x4xf32> -> vector<2x16x12xf32>
    %7 = vector.shape_cast %6 : vector<2x16x12xf32> to vector<32x12xf32>
    %c0_2 = arith.constant 0 : index
    %c0_3 = arith.constant 0 : index
    %8 = vector.load %arg3[%c0_2, %c0_3] : memref<12x8xf32, #tpu.memory_space<vmem>>, vector<12x8xf32>
    %cst_4 = arith.constant dense<0.000000e+00> : vector<32x8xf32>
    %9 = tpu.matmul %7, %8, %cst_4 {dimension_numbers = #tpu.dot_dimension_numbers<[1], [0], [0], [1], [0, 0, 1, 1], [], []>} : vector<32x12xf32>, vector<12x8xf32>, vector<32x8xf32> -> vector<32x8xf32>
    %10 = arith.mulf %9, %9 : vector<32x8xf32>
    %cst_5 = arith.constant dense<0.000000e+00> : vector<32xf32>
    %11 = vector.multi_reduction <add>, %10, %cst_5 [1] : vector<32x8xf32> to vector<32xf32>
    %12 = vector.shape_cast %11 : vector<32xf32> to vector<32x1xf32>
    %cst_6 = arith.constant 8.000000e+00 : f32
    %13 = vector.broadcast %cst_6 : f32 to vector<32x1xf32>
    %14 = arith.divf %12, %13 : vector<32x1xf32>
    %cst_7 = arith.constant 9.99999997E-7 : f32
    %15 = vector.broadcast %cst_7 : f32 to vector<32x1xf32>
    %16 = arith.addf %14, %15 : vector<32x1xf32>
    %17 = math.rsqrt %16 : vector<32x1xf32>
    %18 = vector.broadcast %17 : vector<32x1xf32> to vector<32x8xf32>
    %19 = arith.mulf %9, %18 : vector<32x8xf32>
    %c0_8 = arith.constant 0 : index
    %c0_9 = arith.constant 0 : index
    %20 = vector.load %arg4[%c0_8, %c0_9] : memref<1x8xf32, #tpu.memory_space<vmem>>, vector<1x8xf32>
    %21 = vector.broadcast %20 : vector<1x8xf32> to vector<32x8xf32>
    %22 = arith.mulf %19, %21 : vector<32x8xf32>
    %cst_10 = arith.constant 0.000000e+00 : f32
    %23 = vector.broadcast %cst_10 : f32 to vector<32x8xf32>
    %24 = arith.subf %23, %22 : vector<32x8xf32>
    %25 = math.exp %24 : vector<32x8xf32>
    %cst_11 = arith.constant 1.000000e+00 : f32
    %26 = vector.broadcast %cst_11 : f32 to vector<32x8xf32>
    %27 = arith.addf %26, %25 : vector<32x8xf32>
    %cst_12 = arith.constant 1.000000e+00 : f32
    %28 = vector.broadcast %cst_12 : f32 to vector<32x8xf32>
    %29 = arith.divf %28, %27 : vector<32x8xf32>
    %30 = arith.mulf %22, %29 : vector<32x8xf32>
    %31 = vector.shape_cast %30 : vector<32x8xf32> to vector<2x16x8xf32>
    %cst_13 = arith.constant 0.000000e+00 : f32
    %32 = vector.broadcast %cst_13 : f32 to vector<2x2x8xf32>
    %33 = tpu.concatenate %32, %31, %32 in 1 : vector<2x2x8xf32>, vector<2x16x8xf32>, vector<2x2x8xf32> -> vector<2x20x8xf32>
    %34 = vector.extract_strided_slice %33 {offsets = [0, 4, 0], sizes = [2, 16, 8], strides = [1, 1, 1]} : vector<2x20x8xf32> to vector<2x16x8xf32>
    %35 = vector.extract_strided_slice %33 {offsets = [0, 3, 0], sizes = [2, 16, 8], strides = [1, 1, 1]} : vector<2x20x8xf32> to vector<2x16x8xf32>
    %36 = vector.extract_strided_slice %33 {offsets = [0, 2, 0], sizes = [2, 16, 8], strides = [1, 1, 1]} : vector<2x20x8xf32> to vector<2x16x8xf32>
    %37 = vector.extract_strided_slice %33 {offsets = [0, 1, 0], sizes = [2, 16, 8], strides = [1, 1, 1]} : vector<2x20x8xf32> to vector<2x16x8xf32>
    %38 = vector.extract_strided_slice %33 {offsets = [0, 0, 0], sizes = [2, 16, 8], strides = [1, 1, 1]} : vector<2x20x8xf32> to vector<2x16x8xf32>
    %39 = tpu.concatenate %34, %35, %36, %37, %38 in 2 : vector<2x16x8xf32>, vector<2x16x8xf32>, vector<2x16x8xf32>, vector<2x16x8xf32>, vector<2x16x8xf32> -> vector<2x16x40xf32>
    %40 = vector.shape_cast %39 : vector<2x16x40xf32> to vector<32x40xf32>
    %c0_14 = arith.constant 0 : index
    %c0_15 = arith.constant 0 : index
    %41 = vector.load %arg5[%c0_14, %c0_15] : memref<40x8xf32, #tpu.memory_space<vmem>>, vector<40x8xf32>
    %cst_16 = arith.constant dense<0.000000e+00> : vector<32x8xf32>
    %42 = tpu.matmul %40, %41, %cst_16 {dimension_numbers = #tpu.dot_dimension_numbers<[1], [0], [0], [1], [0, 0, 1, 1], [], []>} : vector<32x40xf32>, vector<40x8xf32>, vector<32x8xf32> -> vector<32x8xf32>
    %c0_17 = arith.constant 0 : index
    %c0_18 = arith.constant 0 : index
    %43 = vector.load %arg6[%c0_17, %c0_18] : memref<1x8xf32, #tpu.memory_space<vmem>>, vector<1x8xf32>
    %44 = vector.broadcast %43 : vector<1x8xf32> to vector<32x8xf32>
    %45 = arith.addf %42, %44 : vector<32x8xf32>
    %46 = arith.mulf %45, %45 : vector<32x8xf32>
    %cst_19 = arith.constant dense<0.000000e+00> : vector<32xf32>
    %47 = vector.multi_reduction <add>, %46, %cst_19 [1] : vector<32x8xf32> to vector<32xf32>
    %48 = vector.shape_cast %47 : vector<32xf32> to vector<32x1xf32>
    %cst_20 = arith.constant 8.000000e+00 : f32
    %49 = vector.broadcast %cst_20 : f32 to vector<32x1xf32>
    %50 = arith.divf %48, %49 : vector<32x1xf32>
    %cst_21 = arith.constant 9.99999997E-7 : f32
    %51 = vector.broadcast %cst_21 : f32 to vector<32x1xf32>
    %52 = arith.addf %50, %51 : vector<32x1xf32>
    %53 = math.rsqrt %52 : vector<32x1xf32>
    %54 = vector.broadcast %53 : vector<32x1xf32> to vector<32x8xf32>
    %55 = arith.mulf %45, %54 : vector<32x8xf32>
    %c0_22 = arith.constant 0 : index
    %c0_23 = arith.constant 0 : index
    %56 = vector.load %arg7[%c0_22, %c0_23] : memref<1x8xf32, #tpu.memory_space<vmem>>, vector<1x8xf32>
    %57 = vector.broadcast %56 : vector<1x8xf32> to vector<32x8xf32>
    %58 = arith.mulf %55, %57 : vector<32x8xf32>
    %c0_24 = arith.constant 0 : index
    %c0_25 = arith.constant 0 : index
    %59 = vector.load %arg8[%c0_24, %c0_25] : memref<1x8xf32, #tpu.memory_space<vmem>>, vector<1x8xf32>
    %60 = vector.broadcast %59 : vector<1x8xf32> to vector<32x8xf32>
    %61 = arith.addf %58, %60 : vector<32x8xf32>
    %62 = tpu.iota {dimensions = array<i32: 0>} : vector<32x8xi32>
    %63 = tpu.iota {dimensions = array<i32: 1>} : vector<32x8xi32>
    %c32_i32 = arith.constant 32 : i32
    %64 = arith.muli %arg0, %c32_i32 : i32
    %65 = vector.broadcast %64 : i32 to vector<32x8xi32>
    %66 = arith.addi %65, %62 : vector<32x8xi32>
    %c8_i32 = arith.constant 8 : i32
    %67 = vector.broadcast %c8_i32 : i32 to vector<32x8xi32>
    %68 = arith.muli %66, %67 : vector<32x8xi32>
    %69 = arith.addi %68, %63 : vector<32x8xi32>
    %c0_26 = arith.constant 0 : index
    %70 = memref.load %arg1[%c0_26] : memref<1xi32, #tpu.memory_space<smem>>
    %c-1640531527_i32 = arith.constant -1640531527 : i32
    %71 = arith.muli %70, %c-1640531527_i32 : i32
    %72 = vector.broadcast %71 : i32 to vector<32x8xi32>
    %73 = arith.addi %69, %72 : vector<32x8xi32>
    %c16_i32 = arith.constant 16 : i32
    %74 = vector.broadcast %c16_i32 : i32 to vector<32x8xi32>
    %75 = arith.shrui %73, %74 : vector<32x8xi32>
    %76 = arith.xori %73, %75 : vector<32x8xi32>
    %c-2048144789_i32 = arith.constant -2048144789 : i32
    %77 = vector.broadcast %c-2048144789_i32 : i32 to vector<32x8xi32>
    %78 = arith.muli %76, %77 : vector<32x8xi32>
    %c13_i32 = arith.constant 13 : i32
    %79 = vector.broadcast %c13_i32 : i32 to vector<32x8xi32>
    %80 = arith.shrui %78, %79 : vector<32x8xi32>
    %81 = arith.xori %78, %80 : vector<32x8xi32>
    %c-1028477387_i32 = arith.constant -1028477387 : i32
    %82 = vector.broadcast %c-1028477387_i32 : i32 to vector<32x8xi32>
    %83 = arith.muli %81, %82 : vector<32x8xi32>
    %c16_i32_27 = arith.constant 16 : i32
    %84 = vector.broadcast %c16_i32_27 : i32 to vector<32x8xi32>
    %85 = arith.shrui %83, %84 : vector<32x8xi32>
    %86 = arith.xori %83, %85 : vector<32x8xi32>
    %c-1288490189_i32 = arith.constant -1288490189 : i32
    %87 = vector.broadcast %c-1288490189_i32 : i32 to vector<32x8xi32>
    %88 = arith.cmpi sge, %86, %87 : vector<32x8xi32>
    %cst_28 = arith.constant 1.250000e+00 : f32
    %89 = vector.broadcast %cst_28 : f32 to vector<32x8xf32>
    %90 = arith.mulf %61, %89 : vector<32x8xf32>
    %cst_29 = arith.constant 0.000000e+00 : f32
    %91 = vector.broadcast %cst_29 : f32 to vector<32x8xf32>
    %92 = arith.select %88, %90, %91 : vector<32x8xi1>, vector<32x8xf32>
    %93 = vector.shape_cast %92 : vector<32x8xf32> to vector<2x16x8xf32>
    %c0_30 = arith.constant 0 : index
    %c0_31 = arith.constant 0 : index
    %c0_32 = arith.constant 0 : index
    %94 = vector.load %arg9[%c0_30, %c0_31, %c0_32] : memref<2x16x8xf32, #tpu.memory_space<vmem>>, vector<2x16x8xf32>
    tpu.vector_store %arg9[%c0_30, %c0_31, %c0_32], %93 {strides = array<i32>} : memref<2x16x8xf32, #tpu.memory_space<vmem>>, vector<2x16x8xf32>,
    return
  }
  func.func @transform_0(%arg0: i32, %arg1: memref<1xi32, #tpu.memory_space<smem>>) -> (i32, i32, i32) {
    %c0_i32 = arith.constant 0 : i32
    %c0_i32_0 = arith.constant 0 : i32
    %c0_i32_1 = arith.constant 0 : i32
    return %arg0, %c0_i32, %c0_i32_0 : i32, i32, i32
  }
  func.func @transform_1(%arg0: i32, %arg1: memref<1xi32, #tpu.memory_space<smem>>) -> (i32, i32) {
    %c0_i32 = arith.constant 0 : i32
    %c0_i32_0 = arith.constant 0 : i32
    %c0_i32_1 = arith.constant 0 : i32
    return %c0_i32, %c0_i32_0 : i32, i32
  }
  func.func @transform_2(%arg0: i32, %arg1: memref<1xi32, #tpu.memory_space<smem>>) -> (i32, i32) {
    %c0_i32 = arith.constant 0 : i32
    %c0_i32_0 = arith.constant 0 : i32
    %c0_i32_1 = arith.constant 0 : i32
    return %c0_i32, %c0_i32_0 : i32, i32
  }
  func.func @transform_3(%arg0: i32, %arg1: memref<1xi32, #tpu.memory_space<smem>>) -> (i32, i32) {
    %c0_i32 = arith.constant 0 : i32
    %c0_i32_0 = arith.constant 0 : i32
    %c0_i32_1 = arith.constant 0 : i32
    return %c0_i32, %c0_i32_0 : i32, i32
  }
  func.func @transform_4(%arg0: i32, %arg1: memref<1xi32, #tpu.memory_space<smem>>) -> (i32, i32) {
    %c0_i32 = arith.constant 0 : i32
    %c0_i32_0 = arith.constant 0 : i32
    %c0_i32_1 = arith.constant 0 : i32
    return %c0_i32, %c0_i32_0 : i32, i32
  }
  func.func @transform_5(%arg0: i32, %arg1: memref<1xi32, #tpu.memory_space<smem>>) -> (i32, i32) {
    %c0_i32 = arith.constant 0 : i32
    %c0_i32_0 = arith.constant 0 : i32
    %c0_i32_1 = arith.constant 0 : i32
    return %c0_i32, %c0_i32_0 : i32, i32
  }
  func.func @transform_6(%arg0: i32, %arg1: memref<1xi32, #tpu.memory_space<smem>>) -> (i32, i32) {
    %c0_i32 = arith.constant 0 : i32
    %c0_i32_0 = arith.constant 0 : i32
    %c0_i32_1 = arith.constant 0 : i32
    return %c0_i32, %c0_i32_0 : i32, i32
  }
  func.func @transform_7(%arg0: i32, %arg1: memref<1xi32, #tpu.memory_space<smem>>) -> (i32, i32, i32) {
    %c0_i32 = arith.constant 0 : i32
    %c0_i32_0 = arith.constant 0 : i32
    %c0_i32_1 = arith.constant 0 : i32
    return %arg0, %c0_i32, %c0_i32_0 : i32, i32, i32
  }
}

</mosaic_0001>

<llo_original>
// kernel: tpu_custom_call.1
$region0: #{tpu_custom_call.1}
  #allocation0 [shape = 'u32[]', space=smem, size = 0x4, offset = 0x4, fixed_abs, tag = 'smem constant byte address 0x4 - core index']
  #allocation1 [shape = 'u32[144,128]{1,0:T(1,128)}', space=vmem, size = 0x12000, scoped, tag = 'internal scratch']
  #allocation2 [shape = 's32[1]{0}', space=sflag, size = 0x4, scoped, tag = 'scoped memory for tpu_custom_call.1']
  #allocation3 [shape = 's32[1]{0:T(128)S(6)}', space=smem, size = 0x200, scoped, tag = 'prefetched SMEM operand 0']
  %s0 = inlined_call_operand.<no memory space> [shape: s32[1], index: 0, kind: input, shape index: {}]
  %s1 = inlined_call_operand.vmem [shape: f32[2,16,4], index: 1, kind: input, shape index: {}]
  %s2 = inlined_call_operand.vmem [shape: f32[12,8], index: 2, kind: input, shape index: {}]
  %s3 = inlined_call_operand.vmem [shape: f32[1,8], index: 3, kind: input, shape index: {}]
  %s4 = inlined_call_operand.vmem [shape: f32[40,8], index: 4, kind: input, shape index: {}]
  %s5 = inlined_call_operand.vmem [shape: f32[1,8], index: 5, kind: input, shape index: {}]
  %s6 = inlined_call_operand.vmem [shape: f32[1,8], index: 6, kind: input, shape index: {}]
  %s7 = inlined_call_operand.vmem [shape: f32[1,8], index: 7, kind: input, shape index: {}]
  %s8 = inlined_call_operand.vmem [shape: f32[2,16,8], index: 8, kind: output, shape index: {}]
  %s9 = sld [smem:[#allocation0]]
  $region38: #{tpu_custom_call.1} parent=0
    _
  %s11 = ssub.s32 1, %s9
  %s12 = scalar_select 0, %s11, %s9
  %13 = sst [smem:[#allocation3]] %s0
  // Predicated region
  $region2: #{tpu_custom_call.1} parent=0 // pred_check
    _
  $region3: #{tpu_custom_call.1} parent=0 // pred_check_branch
    %15 = sbr.rel (0) target = $region5
  $region4: #{tpu_custom_call.1} parent=0 // pred_region
    _
  $region5: #{tpu_custom_call.1} parent=0 // pred_fallthru
    _
  // Predicated region
  $region6: #{tpu_custom_call.1} parent=0 // pred_check
    _
  $region7: #{tpu_custom_call.1} parent=0 // pred_check_branch
    %17 = sbr.rel (0) target = $region9
  $region8: #{tpu_custom_call.1} parent=0 // pred_region
    _
  $region9: #{tpu_custom_call.1} parent=0 // pred_fallthru
    _
  // Predicated region
  $region10: #{tpu_custom_call.1} parent=0 // pred_check
    _
  $region11: #{tpu_custom_call.1} parent=0 // pred_check_branch
    %19 = sbr.rel (0) target = $region13
  $region12: #{tpu_custom_call.1} parent=0 // pred_region
    _
  $region13: #{tpu_custom_call.1} parent=0 // pred_fallthru
    _
  // Predicated region
  $region14: #{tpu_custom_call.1} parent=0 // pred_check
    _
  $region15: #{tpu_custom_call.1} parent=0 // pred_check_branch
    %21 = sbr.rel (0) target = $region17
  $region16: #{tpu_custom_call.1} parent=0 // pred_region
    _
  $region17: #{tpu_custom_call.1} parent=0 // pred_fallthru
    _
  // Predicated region
  $region18: #{tpu_custom_call.1} parent=0 // pred_check
    _
  $region19: #{tpu_custom_call.1} parent=0 // pred_check_branch
    %23 = sbr.rel (0) target = $region21
  $region20: #{tpu_custom_call.1} parent=0 // pred_region
    _
  $region21: #{tpu_custom_call.1} parent=0 // pred_fallthru
    _
  // Predicated region
  $region22: #{tpu_custom_call.1} parent=0 // pred_check
    _
  $region23: #{tpu_custom_call.1} parent=0 // pred_check_branch
    %25 = sbr.rel (0) target = $region25
  $region24: #{tpu_custom_call.1} parent=0 // pred_region
    _
  $region25: #{tpu_custom_call.1} parent=0 // pred_fallthru
    _
  // Predicated region
  $region26: #{tpu_custom_call.1} parent=0 // pred_check
    _
  $region27: #{tpu_custom_call.1} parent=0 // pred_check_branch
    %27 = sbr.rel (0) target = $region29
  $region28: #{tpu_custom_call.1} parent=0 // pred_region
    _
  $region29: #{tpu_custom_call.1} parent=0 // pred_fallthru
    _
  %v28 = vld [vmem:[%s1] sm:$0xff]
  %v29 = vld [vmem:[%s1 + $0x8] sm:$0xff]
  %v30 = vld [vmem:[%s1 + $0x10] sm:$0xff]
  %v31 = vld [vmem:[%s1 + $0x18] sm:$0xff]
  %vm36 = vcmask 1040384
  %v37 = vrot.slane %v28, 7
  %v38 = vrot.slane %v29, 7
  %v39 = vsel %vm36, %v37, %v38
  %v40 = vrot.slane %v30, 7
  %v41 = vrot.slane %v31, 7
  %v42 = vsel %vm36, %v40, %v41
  %v49 = vsel %vm36, 0.0, %v37
  %v50 = vsel %vm36, 0.0, %v40
  %v51 = vsel %vm36, %v38, 0.0
  %v52 = vsel %vm36, %v41, 0.0
  %v57 = vrot.slane %v49, 7
  %v58 = vrot.slane %v39, 7
  %v59 = vsel %vm36, %v57, %v58
  %v60 = vrot.slane %v51, 7
  %v61 = vsel %vm36, %v58, %v60
  %v62 = vrot.slane %v50, 7
  %v63 = vrot.slane %v42, 7
  %v64 = vsel %vm36, %v62, %v63
  %v65 = vrot.slane %v52, 7
  %v66 = vsel %vm36, %v63, %v65
  %67 = vrot.lane.b32.xlu0 %v57, 4
  %v68 = vpop.permute.xlu0 %67
  %69 = vrot.lane.b32.xlu0 %v59, 4
  %v70 = vpop.permute.xlu0 %69
  %71 = vrot.lane.b32.xlu0 %v61, 4
  %v72 = vpop.permute.xlu0 %71
  %73 = vrot.lane.b32.xlu0 %v62, 4
  %v74 = vpop.permute.xlu0 %73
  %75 = vrot.lane.b32.xlu0 %v64, 4
  %v76 = vpop.permute.xlu0 %75
  %77 = vrot.lane.b32.xlu0 %v66, 4
  %v78 = vpop.permute.xlu0 %77
  %vm85 = vcmask 1041408
  %v86 = vrot.slane %v49, 6
  %v87 = vrot.slane %v39, 6
  %v88 = vsel %vm85, %v86, %v87
  %v89 = vrot.slane %v50, 6
  %v90 = vrot.slane %v42, 6
  %v91 = vsel %vm85, %v89, %v90
  %92 = vrot.lane.b32.xlu0 %v86, 8
  %v93 = vpop.permute.xlu0 %92
  %94 = vrot.lane.b32.xlu0 %v88, 8
  %v95 = vpop.permute.xlu0 %94
  %96 = vrot.lane.b32.xlu0 %v87, 8
  %v97 = vpop.permute.xlu0 %96
  %98 = vrot.lane.b32.xlu0 %v89, 8
  %v99 = vpop.permute.xlu0 %98
  %100 = vrot.lane.b32.xlu0 %v91, 8
  %v101 = vpop.permute.xlu0 %100
  %102 = vrot.lane.b32.xlu0 %v90, 8
  %v103 = vpop.permute.xlu0 %102
  %vm110 = vcmask 31744
  %v111 = vsel %vm110, %v49, %v68
  %v112 = vsel %vm110, %v39, %v70
  %v113 = vsel %vm110, %v51, %v72
  %v114 = vsel %vm110, %v50, %v74
  %v115 = vsel %vm110, %v42, %v76
  %v116 = vsel %vm110, %v52, %v78
  %vm117 = vcmask 64512
  %v118 = vsel %vm117, %v111, %v93
  %v119 = vsel %vm117, %v112, %v95
  %v120 = vsel %vm117, %v113, %v97
  %v121 = vsel %vm117, %v114, %v99
  %v122 = vsel %vm117, %v115, %v101
  %v123 = vsel %vm117, %v116, %v103
  %vm130 = vcmask 1045504
  %v131 = vrot.slane %v118, 2
  %v132 = vrot.slane %v119, 2
  %v133 = vsel %vm130, %v131, %v132
  %v134 = vrot.slane %v120, 2
  %v135 = vsel %vm130, %v132, %v134
  %v136 = vrot.slane %v121, 2
  %v137 = vrot.slane %v122, 2
  %v138 = vsel %vm130, %v136, %v137
  %v139 = vrot.slane %v123, 2
  %v140 = vsel %vm130, %v137, %v139
  %v141 = vld [vmem:[%s2] sm:$0xff]
  %v142 = vld [vmem:[%s2 + $0x8] sm:$0xf]
  %vm143 = vcmask 97280
  %v144 = vsel %vm143, %v133, 0
  %v146 = vsel %vm143, %v135, 0
  %v148 = vsel %vm143, %v138, 0
  %v150 = vsel %vm143, %v140, 0
  %vm152 = vcmask 1043456
  %v154 = vsel %vm152, %v142, 0
  %156 = vmatprep.subr.mxu0 0.0
  %157 = vmatpush1.msra.mxu0 0.0
  %158 = vmatprep.subr.mxu0 0.0
  %159 = vmatpush1.msra.mxu0 0.0
  %160 = vmatprep.subr.mxu0 0.0
  %161 = vmatpush1.msra.mxu0 0.0
  %162 = vmatprep.subr.mxu0 0.0
  %163 = vmatpush1.msra.mxu0 0.0
  %164 = vmatprep.subr.mxu0 0.0
  %165 = vmatpush1.msra.mxu0 0.0
  %166 = vmatprep.subr.mxu0 0.0
  %167 = vmatpush1.msra.mxu0 0.0
  %168 = vmatprep.subr.mxu0 0.0
  %169 = vmatpush1.msra.mxu0 0.0
  %170 = vmatprep.subr.mxu0 0.0
  %171 = vmatpush1.msra.mxu0 0.0
  %172 = vmatprep.subr.mxu0 0.0
  %173 = vmatpush1.msra.mxu0 0.0
  %174 = vmatprep.subr.mxu0 0.0
  %175 = vmatpush1.msra.mxu0 0.0
  %176 = vmatprep.subr.mxu0 0.0
  %177 = vmatpush1.msra.mxu0 0.0
  %178 = vmatprep.subr.mxu0 0.0
  %179 = vmatpush1.msra.mxu0 0.0
  %180 = vmatprep.subr.mxu0 0.0
  %181 = vmatpush1.msra.mxu0 0.0
  %182 = vmatprep.subr.mxu0 0.0
  %183 = vmatpush1.msra.mxu0 0.0
  %184 = vmatprep.subr.mxu0 0.0
  %185 = vmatpush1.msra.mxu0 %v154
  %186 = vmatprep.subr.mxu0 0.0
  %187 = vmatpush1.msra.mxu0 %v141
  %188 = vmatprep.subr.mxu0 0.0
  %189 = vmatpush2.msra.mxu0 0.0
  %190 = vmatprep.subr.mxu0 0.0
  %191 = vmatpush2.msra.mxu0 0.0
  %192 = vmatprep.subr.mxu0 0.0
  %193 = vmatpush2.msra.mxu0 0.0
  %194 = vmatprep.subr.mxu0 0.0
  %195 = vmatpush2.msra.mxu0 0.0
  %196 = vmatprep.subr.mxu0 0.0
  %197 = vmatpush2.msra.mxu0 0.0
  %198 = vmatprep.subr.mxu0 0.0
  %199 = vmatpush2.msra.mxu0 0.0
  %200 = vmatprep.subr.mxu0 0.0
  %201 = vmatpush2.msra.mxu0 0.0
  %202 = vmatprep.subr.mxu0 0.0
  %203 = vmatpush2.msra.mxu0 0.0
  %204 = vmatprep.subr.mxu0 0.0
  %205 = vmatpush2.msra.mxu0 0.0
  %206 = vmatprep.subr.mxu0 0.0
  %207 = vmatpush2.msra.mxu0 0.0
  %208 = vmatprep.subr.mxu0 0.0
  %209 = vmatpush2.msra.mxu0 0.0
  %210 = vmatprep.subr.mxu0 0.0
  %211 = vmatpush2.msra.mxu0 0.0
  %212 = vmatprep.subr.mxu0 0.0
  %213 = vmatpush2.msra.mxu0 0.0
  %214 = vmatprep.subr.mxu0 0.0
  %215 = vmatpush2.msra.mxu0 0.0
  %216 = vmatprep.subr.mxu0 0.0
  %217 = vmatpush2.msra.mxu0 0.0
  %218 = vmatprep.subr.mxu0 0.0
  %219 = vmatpush2.msra.mxu0 0.0
  %220 = vmatprep.mubr.f32.mxu0 0.0
  %221 = vmatmul.mubr.f32.gmra.mxu0 %v144
  %v222 = vpop.f32.mrf.mxu0
  %v223 = vadd.f32 0.0, %v222
  %v224 = vpop.f32.mrf.mxu0
  %225 = vmatprep.mubr.f32.mxu0 0.0
  %226 = vmatmul.mubr.f32.gmra.mxu0 %v146
  %v227 = vpop.f32.mrf.mxu0
  %v228 = vadd.f32 0.0, %v227
  %v229 = vpop.f32.mrf.mxu0
  %230 = vmatprep.mubr.f32.mxu0 0.0
  %231 = vmatmul.mubr.f32.gmra.mxu0 %v148
  %v232 = vpop.f32.mrf.mxu0
  %v233 = vadd.f32 0.0, %v232
  %v234 = vpop.f32.mrf.mxu0
  %235 = vmatprep.mubr.f32.mxu0 0.0
  %236 = vmatmul.mubr.f32.gmra.mxu0 %v150
  %v237 = vpop.f32.mrf.mxu0
  %v238 = vadd.f32 0.0, %v237
  %v239 = vpop.f32.mrf.mxu0
  %240 = vdwg.mxu0
  %v241 = vmul.f32 %v223, %v223
  %v242 = vmul.f32 %v228, %v228
  %v243 = vmul.f32 %v233, %v233
  %v244 = vmul.f32 %v238, %v238
  %v245 = vsel %vm117, %v241, 0.0
  %246 = vadd.xlane.f32.xlu0 %v245
  %v247 = vpop.xlane.xlu0 %246
  %v248 = vsel %vm117, %v242, 0.0
  %249 = vadd.xlane.f32.xlu0 %v248
  %v250 = vpop.xlane.xlu0 %249
  %v251 = vsel %vm117, %v243, 0.0
  %252 = vadd.xlane.f32.xlu0 %v251
  %v253 = vpop.xlane.xlu0 %252
  %v254 = vsel %vm117, %v244, 0.0
  %255 = vadd.xlane.f32.xlu0 %v254
  %v256 = vpop.xlane.xlu0 %255
  %v257 = vrcp.pop 8.0
  %v258 = vmul.f32 %v247, %v257
  %v259 = vmul.f32 %v250, %v257
  %v260 = vmul.f32 %v253, %v257
  %v261 = vmul.f32 %v256, %v257
  %v262 = vadd.f32 %v258, 1e-06
  %v263 = vadd.f32 %v259, 1e-06
  %v264 = vadd.f32 %v260, 1e-06
  %v265 = vadd.f32 %v261, 1e-06
  %v266 = vrsqrt.pop %v262
  %v267 = vrsqrt.pop %v263
  %v268 = vrsqrt.pop %v264
  %v269 = vrsqrt.pop %v265
  %v270 = vmul.f32 %v223, %v266
  %v271 = vmul.f32 %v228, %v267
  %v272 = vmul.f32 %v233, %v268
  %v273 = vmul.f32 %v238, %v269
  %v274 = vld [vmem:[%s3] sm:$0x1]
  %v276 = vlaneseq
  %v277 = vshrl.u32 %v276, 7
  %v278 = vsub.s32 0, %v277
  %v279 = vrot.slane %v274, %v278
  %v281 = vmul.f32 %v270, %v279
  %v282 = vmul.f32 %v271, %v279
  %v283 = vmul.f32 %v272, %v279
  %v284 = vmul.f32 %v273, %v279
  %v285 = vsub.f32 0.0, %v281
  %v286 = vsub.f32 0.0, %v282
  %v287 = vsub.f32 0.0, %v283
  %v288 = vsub.f32 0.0, %v284
  %v289 = vmul.f32 %v285, 1.442695
  %v290 = vpow.pop %v289
  %v291 = vmul.f32 %v286, 1.442695
  %v292 = vpow.pop %v291
  %v293 = vmul.f32 %v287, 1.442695
  %v294 = vpow.pop %v293
  %v295 = vmul.f32 %v288, 1.442695
  %v296 = vpow.pop %v295
  %v297 = vadd.f32 %v290, 1.0
  %v298 = vadd.f32 %v292, 1.0
  %v299 = vadd.f32 %v294, 1.0
  %v300 = vadd.f32 %v296, 1.0
  %v301 = vrcp.pop %v297
  %v302 = vmul.f32 1.0, %v301
  %v303 = vrcp.pop %v298
  %v304 = vmul.f32 1.0, %v303
  %v305 = vrcp.pop %v299
  %v306 = vmul.f32 1.0, %v305
  %v307 = vrcp.pop %v300
  %v308 = vmul.f32 1.0, %v307
  %v309 = vmul.f32 %v281, %v302
  %v310 = vmul.f32 %v282, %v304
  %v311 = vmul.f32 %v283, %v306
  %v312 = vmul.f32 %v284, %v308
  %v317 = vrot.slane %v309, 6
  %v318 = vrot.slane %v310, 6
  %v319 = vsel %vm85, %v317, %v318
  %v320 = vrot.slane %v311, 6
  %v321 = vrot.slane %v312, 6
  %v322 = vsel %vm85, %v320, %v321
  %v329 = vsel %vm85, 0.0, %v317
  %v330 = vsel %vm85, 0.0, %v320
  %v331 = vsel %vm85, %v318, 0.0
  %v332 = vsel %vm85, %v321, 0.0
  %v337 = vrot.slane %v329, 7
  %v338 = vrot.slane %v319, 7
  %v339 = vsel %vm36, %v337, %v338
  %v340 = vrot.slane %v331, 7
  %v341 = vsel %vm36, %v338, %v340
  %v342 = vrot.slane %v330, 7
  %v343 = vrot.slane %v322, 7
  %v344 = vsel %vm36, %v342, %v343
  %v345 = vrot.slane %v332, 7
  %v346 = vsel %vm36, %v343, %v345
  %347 = vrot.lane.b32.xlu0 %v337, 8
  %v348 = vpop.permute.xlu0 %347
  %349 = vrot.lane.b32.xlu0 %v339, 8
  %v350 = vpop.permute.xlu0 %349
  %351 = vrot.lane.b32.xlu0 %v341, 8
  %v352 = vpop.permute.xlu0 %351
  %353 = vrot.lane.b32.xlu0 %v342, 8
  %v354 = vpop.permute.xlu0 %353
  %355 = vrot.lane.b32.xlu0 %v344, 8
  %v356 = vpop.permute.xlu0 %355
  %357 = vrot.lane.b32.xlu0 %v346, 8
  %v358 = vpop.permute.xlu0 %357
  %v365 = vrot.slane %v329, 6
  %v366 = vrot.slane %v319, 6
  %v367 = vsel %vm85, %v365, %v366
  %v368 = vrot.slane %v331, 6
  %v369 = vsel %vm85, %v366, %v368
  %v370 = vrot.slane %v330, 6
  %v371 = vrot.slane %v322, 6
  %v372 = vsel %vm85, %v370, %v371
  %v373 = vrot.slane %v332, 6
  %v374 = vsel %vm85, %v371, %v373
  %375 = vrot.lane.b32.xlu0 %v365, 16
  %v376 = vpop.permute.xlu0 %375
  %377 = vrot.lane.b32.xlu0 %v367, 16
  %v378 = vpop.permute.xlu0 %377
  %379 = vrot.lane.b32.xlu0 %v369, 16
  %v380 = vpop.permute.xlu0 %379
  %381 = vrot.lane.b32.xlu0 %v370, 16
  %v382 = vpop.permute.xlu0 %381
  %383 = vrot.lane.b32.xlu0 %v372, 16
  %v384 = vpop.permute.xlu0 %383
  %385 = vrot.lane.b32.xlu0 %v374, 16
  %v386 = vpop.permute.xlu0 %385
  %vm393 = vcmask 1042432
  %v394 = vrot.slane %v329, 5
  %v395 = vrot.slane %v319, 5
  %v396 = vsel %vm393, %v394, %v395
  %v397 = vrot.slane %v331, 5
  %v398 = vsel %vm393, %v395, %v397
  %v399 = vrot.slane %v330, 5
  %v400 = vrot.slane %v322, 5
  %v401 = vsel %vm393, %v399, %v400
  %v402 = vrot.slane %v332, 5
  %v403 = vsel %vm393, %v400, %v402
  %404 = vrot.lane.b32.xlu0 %v394, 24
  %v405 = vpop.permute.xlu0 %404
  %406 = vrot.lane.b32.xlu0 %v396, 24
  %v407 = vpop.permute.xlu0 %406
  %408 = vrot.lane.b32.xlu0 %v398, 24
  %v409 = vpop.permute.xlu0 %408
  %410 = vrot.lane.b32.xlu0 %v399, 24
  %v411 = vpop.permute.xlu0 %410
  %412 = vrot.lane.b32.xlu0 %v401, 24
  %v413 = vpop.permute.xlu0 %412
  %414 = vrot.lane.b32.xlu0 %v403, 24
  %v415 = vpop.permute.xlu0 %414
  %v422 = vrot.slane %v329, 4
  %v423 = vrot.slane %v319, 4
  %v424 = vsel %vm152, %v422, %v423
  %v425 = vrot.slane %v330, 4
  %v426 = vrot.slane %v322, 4
  %v427 = vsel %vm152, %v425, %v426
  %428 = vrot.lane.b32.xlu0 %v422, 32
  %v429 = vpop.permute.xlu0 %428
  %430 = vrot.lane.b32.xlu0 %v424, 32
  %v431 = vpop.permute.xlu0 %430
  %432 = vrot.lane.b32.xlu0 %v423, 32
  %v433 = vpop.permute.xlu0 %432
  %434 = vrot.lane.b32.xlu0 %v425, 32
  %v435 = vpop.permute.xlu0 %434
  %436 = vrot.lane.b32.xlu0 %v427, 32
  %v437 = vpop.permute.xlu0 %436
  %438 = vrot.lane.b32.xlu0 %v426, 32
  %v439 = vpop.permute.xlu0 %438
  %v446 = vsel %vm117, %v329, %v348
  %v447 = vsel %vm117, %v319, %v350
  %v448 = vsel %vm117, %v331, %v352
  %v449 = vsel %vm117, %v330, %v354
  %v450 = vsel %vm117, %v322, %v356
  %v451 = vsel %vm117, %v332, %v358
  %vm452 = vcmask 130048
  %v453 = vsel %vm452, %v446, %v376
  %v454 = vsel %vm452, %v447, %v378
  %v455 = vsel %vm452, %v448, %v380
  %v456 = vsel %vm452, %v449, %v382
  %v457 = vsel %vm452, %v450, %v384
  %v458 = vsel %vm452, %v451, %v386
  %vm459 = vcmask 195584
  %v460 = vsel %vm459, %v453, %v405
  %v461 = vsel %vm459, %v454, %v407
  %v462 = vsel %vm459, %v455, %v409
  %v463 = vsel %vm459, %v456, %v411
  %v464 = vsel %vm459, %v457, %v413
  %v465 = vsel %vm459, %v458, %v415
  %vm466 = vcmask 261120
  %v467 = vsel %vm466, %v460, %v429
  %v468 = vsel %vm466, %v461, %v431
  %v469 = vsel %vm466, %v462, %v433
  %v470 = vsel %vm466, %v463, %v435
  %v471 = vsel %vm466, %v464, %v437
  %v472 = vsel %vm466, %v465, %v439
  %v479 = vrot.slane %v467, 4
  %v480 = vrot.slane %v468, 4
  %v481 = vsel %vm152, %v479, %v480
  %v482 = vrot.slane %v469, 4
  %v483 = vsel %vm152, %v480, %v482
  %v484 = vrot.slane %v470, 4
  %v485 = vrot.slane %v471, 4
  %v486 = vsel %vm152, %v484, %v485
  %v487 = vrot.slane %v472, 4
  %v488 = vsel %vm152, %v485, %v487
  %v489 = vld [vmem:[%s4] sm:$0xff]
  %v490 = vld [vmem:[%s4 + $0x8] sm:$0xff]
  %v491 = vld [vmem:[%s4 + $0x10] sm:$0xff]
  %v492 = vld [vmem:[%s4 + $0x18] sm:$0xff]
  %v493 = vld [vmem:[%s4 + $0x20] sm:$0xff]
  %v494 = vld [vmem:[%s5] sm:$0x1]
  %v496 = vlaneseq
  %v497 = vshrl.u32 %v496, 7
  %v498 = vsub.s32 0, %v497
  %v499 = vrot.slane %v494, %v498
  %vm501 = vcmask 326656
  %v502 = vsel %vm501, %v481, 0
  %v504 = vsel %vm501, %v483, 0
  %v506 = vsel %vm501, %v486, 0
  %v508 = vsel %vm501, %v488, 0
  %510 = vmatprep.subr.mxu0 0.0
  %511 = vmatpush1.msra.mxu0 0.0
  %512 = vmatprep.subr.mxu0 0.0
  %513 = vmatpush1.msra.mxu0 0.0
  %514 = vmatprep.subr.mxu0 0.0
  %515 = vmatpush1.msra.mxu0 0.0
  %516 = vmatprep.subr.mxu0 0.0
  %517 = vmatpush1.msra.mxu0 0.0
  %518 = vmatprep.subr.mxu0 0.0
  %519 = vmatpush1.msra.mxu0 0.0
  %520 = vmatprep.subr.mxu0 0.0
  %521 = vmatpush1.msra.mxu0 0.0
  %522 = vmatprep.subr.mxu0 0.0
  %523 = vmatpush1.msra.mxu0 0.0
  %524 = vmatprep.subr.mxu0 0.0
  %525 = vmatpush1.msra.mxu0 0.0
  %526 = vmatprep.subr.mxu0 0.0
  %527 = vmatpush1.msra.mxu0 0.0
  %528 = vmatprep.subr.mxu0 0.0
  %529 = vmatpush1.msra.mxu0 0.0
  %530 = vmatprep.subr.mxu0 0.0
  %531 = vmatpush1.msra.mxu0 0.0
  %532 = vmatprep.subr.mxu0 0.0
  %533 = vmatpush1.msra.mxu0 %v493
  %534 = vmatprep.subr.mxu0 0.0
  %535 = vmatpush1.msra.mxu0 %v492
  %536 = vmatprep.subr.mxu0 0.0
  %537 = vmatpush1.msra.mxu0 %v491
  %538 = vmatprep.subr.mxu0 0.0
  %539 = vmatpush1.msra.mxu0 %v490
  %540 = vmatprep.subr.mxu0 0.0
  %541 = vmatpush1.msra.mxu0 %v489
  %542 = vmatprep.subr.mxu0 0.0
  %543 = vmatpush2.msra.mxu0 0.0
  %544 = vmatprep.subr.mxu0 0.0
  %545 = vmatpush2.msra.mxu0 0.0
  %546 = vmatprep.subr.mxu0 0.0
  %547 = vmatpush2.msra.mxu0 0.0
  %548 = vmatprep.subr.mxu0 0.0
  %549 = vmatpush2.msra.mxu0 0.0
  %550 = vmatprep.subr.mxu0 0.0
  %551 = vmatpush2.msra.mxu0 0.0
  %552 = vmatprep.subr.mxu0 0.0
  %553 = vmatpush2.msra.mxu0 0.0
  %554 = vmatprep.subr.mxu0 0.0
  %555 = vmatpush2.msra.mxu0 0.0
  %556 = vmatprep.subr.mxu0 0.0
  %557 = vmatpush2.msra.mxu0 0.0
  %558 = vmatprep.subr.mxu0 0.0
  %559 = vmatpush2.msra.mxu0 0.0
  %560 = vmatprep.subr.mxu0 0.0
  %561 = vmatpush2.msra.mxu0 0.0
  %562 = vmatprep.subr.mxu0 0.0
  %563 = vmatpush2.msra.mxu0 0.0
  %564 = vmatprep.subr.mxu0 0.0
  %565 = vmatpush2.msra.mxu0 0.0
  %566 = vmatprep.subr.mxu0 0.0
  %567 = vmatpush2.msra.mxu0 0.0
  %568 = vmatprep.subr.mxu0 0.0
  %569 = vmatpush2.msra.mxu0 0.0
  %570 = vmatprep.subr.mxu0 0.0
  %571 = vmatpush2.msra.mxu0 0.0
  %572 = vmatprep.subr.mxu0 0.0
  %573 = vmatpush2.msra.mxu0 0.0
  %574 = vmatprep.mubr.f32.mxu0 0.0
  %575 = vmatmul.mubr.f32.gmra.mxu0 %v502
  %v576 = vpop.f32.mrf.mxu0
  %v577 = vadd.f32 %v499, %v576
  %v578 = vpop.f32.mrf.mxu0
  %579 = vmatprep.mubr.f32.mxu0 0.0
  %580 = vmatmul.mubr.f32.gmra.mxu0 %v504
  %v581 = vpop.f32.mrf.mxu0
  %v582 = vadd.f32 %v499, %v581
  %v583 = vpop.f32.mrf.mxu0
  %584 = vmatprep.mubr.f32.mxu0 0.0
  %585 = vmatmul.mubr.f32.gmra.mxu0 %v506
  %v586 = vpop.f32.mrf.mxu0
  %v587 = vadd.f32 %v499, %v586
  %v588 = vpop.f32.mrf.mxu0
  %589 = vmatprep.mubr.f32.mxu0 0.0
  %590 = vmatmul.mubr.f32.gmra.mxu0 %v508
  %v591 = vpop.f32.mrf.mxu0
  %v592 = vadd.f32 %v499, %v591
  %v593 = vpop.f32.mrf.mxu0
  %594 = vdwg.mxu0
  %v595 = vmul.f32 %v577, %v577
  %v596 = vmul.f32 %v582, %v582
  %v597 = vmul.f32 %v587, %v587
  %v598 = vmul.f32 %v592, %v592
  %v599 = vsel %vm117, %v595, 0.0
  %600 = vadd.xlane.f32.xlu0 %v599
  %v601 = vpop.xlane.xlu0 %600
  %v602 = vsel %vm117, %v596, 0.0
  %603 = vadd.xlane.f32.xlu0 %v602
  %v604 = vpop.xlane.xlu0 %603
  %v605 = vsel %vm117, %v597, 0.0
  %606 = vadd.xlane.f32.xlu0 %v605
  %v607 = vpop.xlane.xlu0 %606
  %v608 = vsel %vm117, %v598, 0.0
  %609 = vadd.xlane.f32.xlu0 %v608
  %v610 = vpop.xlane.xlu0 %609
  %v611 = vmul.f32 %v601, %v257
  %v612 = vmul.f32 %v604, %v257
  %v613 = vmul.f32 %v607, %v257
  %v614 = vmul.f32 %v610, %v257
  %v615 = vadd.f32 %v611, 1e-06
  %v616 = vadd.f32 %v612, 1e-06
  %v617 = vadd.f32 %v613, 1e-06
  %v618 = vadd.f32 %v614, 1e-06
  %v619 = vrsqrt.pop %v615
  %v620 = vrsqrt.pop %v616
  %v621 = vrsqrt.pop %v617
  %v622 = vrsqrt.pop %v618
  %v623 = vmul.f32 %v577, %v619
  %v624 = vmul.f32 %v582, %v620
  %v625 = vmul.f32 %v587, %v621
  %v626 = vmul.f32 %v592, %v622
  %v627 = vld [vmem:[%s6] sm:$0x1]
  %v629 = vlaneseq
  %v630 = vshrl.u32 %v629, 7
  %v631 = vsub.s32 0, %v630
  %v632 = vrot.slane %v627, %v631
  %v634 = vmul.f32 %v623, %v632
  %v635 = vmul.f32 %v624, %v632
  %v636 = vmul.f32 %v625, %v632
  %v637 = vmul.f32 %v626, %v632
  %v638 = vld [vmem:[%s7] sm:$0x1]
  %v640 = vlaneseq
  %v641 = vshrl.u32 %v640, 7
  %v642 = vsub.s32 0, %v641
  %v643 = vrot.slane %v638, %v642
  %v645 = vadd.f32 %v634, %v643
  %v646 = vadd.f32 %v635, %v643
  %v647 = vadd.f32 %v636, %v643
  %v648 = vadd.f32 %v637, %v643
  %v649 = vlaneseq
  %v650 = vshrl.u32 %v649, 7
  %v651 = vadd.s32 %v650, 8
  %v652 = vadd.s32 %v650, 16
  %v653 = vadd.s32 %v650, 24
  %v654 = vlaneseq
  %v655 = vand.u32 %v654, 127
  %s656 = smul.u32 0, 32
  %v657 = vstv %s656
  %v658 = vadd.s32 %v657, %v650
  %v659 = vadd.s32 %v657, %v651
  %v660 = vadd.s32 %v657, %v652
  %v661 = vadd.s32 %v657, %v653
  %v662 = vmul.u32 %v658, 8
  %v663 = vmul.u32 %v659, 8
  %v664 = vmul.u32 %v660, 8
  %v665 = vmul.u32 %v661, 8
  %v666 = vadd.s32 %v662, %v655
  %v667 = vadd.s32 %v663, %v655
  %v668 = vadd.s32 %v664, %v655
  %v669 = vadd.s32 %v665, %v655
  %s670 = sld [smem:[#allocation3]]
  %s671 = smul.u32 %s670, 2654435769
  %v672 = vstv %s671
  %v673 = vadd.s32 %v666, %v672
  %v674 = vadd.s32 %v667, %v672
  %v675 = vadd.s32 %v668, %v672
  %v676 = vadd.s32 %v669, %v672
  %v677 = vshrl.u32 %v673, 16
  %v678 = vshrl.u32 %v674, 16
  %v679 = vshrl.u32 %v675, 16
  %v680 = vshrl.u32 %v676, 16
  %v681 = vxor.u32 %v673, %v677
  %v682 = vxor.u32 %v674, %v678
  %v683 = vxor.u32 %v675, %v679
  %v684 = vxor.u32 %v676, %v680
  %v685 = vmul.u32 %v681, 2246822507
  %v686 = vmul.u32 %v682, 2246822507
  %v687 = vmul.u32 %v683, 2246822507
  %v688 = vmul.u32 %v684, 2246822507
  %v689 = vshrl.u32 %v685, 13
  %v690 = vshrl.u32 %v686, 13
  %v691 = vshrl.u32 %v687, 13
  %v692 = vshrl.u32 %v688, 13
  %v693 = vxor.u32 %v685, %v689
  %v694 = vxor.u32 %v686, %v690
  %v695 = vxor.u32 %v687, %v691
  %v696 = vxor.u32 %v688, %v692
  %v697 = vmul.u32 %v693, 3266489909
  %v698 = vmul.u32 %v694, 3266489909
  %v699 = vmul.u32 %v695, 3266489909
  %v700 = vmul.u32 %v696, 3266489909
  %v701 = vshrl.u32 %v697, 16
  %v702 = vshrl.u32 %v698, 16
  %v703 = vshrl.u32 %v699, 16
  %v704 = vshrl.u32 %v700, 16
  %v705 = vxor.u32 %v697, %v701
  %v706 = vxor.u32 %v698, %v702
  %v707 = vxor.u32 %v699, %v703
  %v708 = vxor.u32 %v700, %v704
  %vm709 = vcmp.ge.s32.totalorder %v705, 3006477107
  %vm710 = vcmp.ge.s32.totalorder %v706, 3006477107
  %vm711 = vcmp.ge.s32.totalorder %v707, 3006477107
  %vm712 = vcmp.ge.s32.totalorder %v708, 3006477107
  %v713 = vmul.f32 %v645, 1.25
  %v714 = vmul.f32 %v646, 1.25
  %v715 = vmul.f32 %v647, 1.25
  %v716 = vmul.f32 %v648, 1.25
  %v717 = vsel %vm709, %v713, 0.0
  %v718 = vsel %vm710, %v714, 0.0
  %v719 = vsel %vm711, %v715, 0.0
  %v720 = vsel %vm712, %v716, 0.0
  %721 = vst.msk [vmem:[%s8] sm:$0xff] %vm117, %v717
  %722 = vst.msk [vmem:[%s8 + $0x8] sm:$0xff] %vm117, %v718
  %723 = vst.msk [vmem:[%s8 + $0x10] sm:$0xff] %vm117, %v719
  %724 = vst.msk [vmem:[%s8 + $0x18] sm:$0xff] %vm117, %v720
  // Predicated region
  $region30: #{tpu_custom_call.1} parent=0 // pred_check
    _
  $region31: #{tpu_custom_call.1} parent=0 // pred_check_branch
    %726 = sbr.rel (0) target = $region33
  $region32: #{tpu_custom_call.1} parent=0 // pred_region
    _
  $region33: #{tpu_custom_call.1} parent=0 // pred_fallthru
    _
  // Predicated region
  $region34: #{tpu_custom_call.1} parent=0 // pred_check
    _
  $region35: #{tpu_custom_call.1} parent=0 // pred_check_branch
    %728 = sbr.rel (0) target = $region37
  $region36: #{tpu_custom_call.1} parent=0 // pred_region
    _
  $region37: #{tpu_custom_call.1} parent=0 // pred_fallthru
    _

</llo_original>
